<compile_context>
chip_gen: v6e
topology: v6e:2x2x1
jax: 0.10.0
libtpu: 0.0.40
codegen_flags: <defaults>
</compile_context>

<pallas_src>
import functools
import math

import jax
import jax.numpy as jnp
from jax.experimental import pallas as pl
from jax.experimental.pallas import tpu as pltpu


def _round_up(a, b):
    return (a + b - 1) // b * b


# --------------------------------------------------------------------------- kernel A
def _modulate_kernel(y_ref, wmod_ref, bmod_ref, w2d_ref, ww_ref, *,
                     w_mul, mod_w_mul, mod_b_mul, demodulate, k2):
    # y_ref:    (1, 1, D)            latent for this sample
    # wmod_ref: (D, C_in_p)          modulation-linear weight, pre-transposed, zero-padded
    # bmod_ref: (1, C_in_p)          modulation-linear bias, zero-padded
    # w2d_ref:  (1, C_out_p, K)      conv weight, column order = (tap, ci), K = k^2*C_in_p
    # ww_ref:   (1, C_out_p, K)      bf16 modulated + demodulated weight (output)
    f32 = jnp.float32

    # s = y @ Wmod^T * w_mul + b * b_mul                         -> (1, C_in_p)
    s = (jnp.dot(y_ref[0].astype(f32), wmod_ref[...].astype(f32),
                 preferred_element_type=f32) * mod_w_mul
         + bmod_ref[...].astype(f32) * mod_b_mul)

    # replicate s per tap to match the (tap, ci) column layout    -> (1, K)
    s_k = jnp.concatenate([s] * k2, axis=1)

    ww = w2d_ref[0].astype(f32) * w_mul * s_k                     # (C_out_p, K)

    if demodulate:
        # rsqrt over all taps and input channels (padded entries are exactly zero)
        d = jax.lax.rsqrt(jnp.sum(ww * ww, axis=1, keepdims=True) + 1e-8)
        ww = ww * d

    ww_ref[0] = ww.astype(ww_ref.dtype)


# --------------------------------------------------------------------------- kernel B
def _conv_kernel(ww_ref, xm_ref, xh_ref, o_ref, xst_ref, *, k, Wpad, TN, C_in_p):
    # ww_ref:  (1, C_out_p, K)   bf16 per-sample weight (resident across spatial tiles)
    # xm_ref:  (1, C_in_p, TN)   bf16 main input tile (flat lanes [j*TN, (j+1)*TN))
    # xh_ref:  (1, C_in_p, HB)   bf16 halo tile       (flat lanes [(j+1)*TN, (j+1)*TN+HB))
    # o_ref:   (1, C_out_p, TN)  output tile
    # xst_ref: (K, TN)           bf16 VMEM scratch: stacked k^2 taps (im2col tile)
    #
    # Build the stacked input with k^2 small slice-copies, then ONE MXU matmul with
    # contraction K = k^2 * C_in_p.
    for dh in range(k):
        for dw in range(k):
            t = dh * k + dw
            t0 = dh * Wpad + dw                 # static lane offset of this tap (<= halo <= HB)
            r0 = t * C_in_p                     # sublane-aligned row offset in the scratch
            n1 = TN - t0
            if n1:
                xst_ref[r0:r0 + C_in_p, 0:n1] = xm_ref[0, :, t0:t0 + n1]
            if t0:
                xst_ref[r0:r0 + C_in_p, n1:TN] = xh_ref[0, :, 0:t0]

    acc = jnp.dot(ww_ref[0], xst_ref[...], preferred_element_type=jnp.float32)
    o_ref[0] = acc.astype(o_ref.dtype)


# --------------------------------------------------------------------------- wrapper
def equalized_mod_conv2d(x, y, params, *, ksize, demodulate=True, up=False, down=False):
    if up or down:
        # TODO(synk): up/down paths need conv_transpose + upfirdn2d blur (not kernelized).
        raise NotImplementedError("only the base (stride-1) path is implemented")

    B, C_in, H, W = x.shape
    _, C_out, C_in_w, kh, kw = params["weight"].shape
    assert C_in_w == C_in and kh == ksize and kw == ksize and ksize % 2 == 1
    D = y.shape[1]
    out_dtype = x.dtype
    k2 = ksize * ksize
    p = ksize // 2

    # ---------------- geometry: lane-dense, halo-blocked spatial tiling ----------------
    C_in_p = _round_up(C_in, 16)                    # bf16 sublane tile
    C_out_p = _round_up(C_out, 8)
    K = k2 * C_in_p

    # padded row width so the flat output length H*Wpad is a multiple of 128
    Wpad = _round_up(W + 2 * p, 128 // math.gcd(H, 128))
    N_out = H * Wpad                                # flat output length (multiple of 128)
    halo = 2 * p * Wpad + 2 * p                     # largest tap offset
    HB = _round_up(halo, 128)                       # halo block width (128-multiple)

    # spatial tile TN: multiple of HB, bounded by a VMEM budget for the stacked scratch
    scratch_budget = 8 * 2**20                      # bytes for the (K, TN) bf16 scratch
    tn_tgt = HB * max(1, 2048 // HB)
    tn_cap = HB * max(1, (scratch_budget // (K * 2)) // HB)
    tn_all = HB * (-(-N_out // HB))
    TN = max(HB, min(tn_tgt, tn_cap, tn_all))
    T = -(-N_out // TN)                             # number of spatial tiles
    N_pad = T * TN
    hb_per_tn = TN // HB

    rows = -(-(N_pad + HB) // Wpad)                 # total padded rows (covers halo over-read)
    bot = rows - H - p                              # bottom zero rows (>= p)
    L_in = rows * Wpad

    # ---------------- cheap XLA-side layout prep (fuses with the pads) ----------------
    x_pad = jnp.pad(x, ((0, 0), (0, C_in_p - C_in), (p, bot), (p, Wpad - W - p)))
    x_flat = x_pad.reshape(B, C_in_p, L_in).astype(jnp.bfloat16)

    w = params["weight"][0]                                               # (Co, Ci, k, k)
    w_p = jnp.pad(w, ((0, C_out_p - C_out), (0, C_in_p - C_in), (0, 0), (0, 0)))
    w2d = jnp.transpose(w_p, (0, 2, 3, 1)).reshape(1, C_out_p, K).astype(jnp.float32)
    wmod_t = jnp.pad(params["mod_weight"], ((0, C_in_p - C_in), (0, 0))).T    # (D, C_in_p)
    bmod = jnp.pad(params["mod_bias"], (0, C_in_p - C_in)).reshape(1, C_in_p)
    y_r = y.reshape(B, 1, D)

    # ---------------- kernel A: per-sample modulated + demodulated weight ----------------
    est_a = (2 * D * 4 + D * C_in_p * 4 + C_in_p * 4
             + C_out_p * K * 4 + 2 * C_out_p * K * 2)
    limit_a = int(min(max(2 * est_a, 32 * 2**20), 96 * 2**20))

    mod_kern = functools.partial(
        _modulate_kernel,
        w_mul=float(params["w_mul"]),
        mod_w_mul=float(params["mod_w_mul"]),
        mod_b_mul=float(params["mod_b_mul"]),
        demodulate=bool(demodulate),
        k2=k2)

    ww = pl.pallas_call(
        mod_kern,
        out_shape=jax.ShapeDtypeStruct((B, C_out_p, K), jnp.bfloat16),
        grid=(B,),
        in_specs=[
            pl.BlockSpec((1, 1, D), lambda b: (b, 0, 0)),                                    # y
            pl.BlockSpec((D, C_in_p), lambda b: (0, 0), pipeline_mode=pl.Buffered(1)),       # Wmod
            pl.BlockSpec((1, C_in_p), lambda b: (0, 0), pipeline_mode=pl.Buffered(1)),       # bmod
            pl.BlockSpec((1, C_out_p, K), lambda b: (0, 0, 0), pipeline_mode=pl.Buffered(1)),# conv w
        ],
        out_specs=pl.BlockSpec((1, C_out_p, K), lambda b: (b, 0, 0)),
        compiler_params=pltpu.CompilerParams(
            dimension_semantics=("parallel",),
            vmem_limit_bytes=limit_a),
    )(y_r, wmod_t, bmod, w2d)

    # ---------------- kernel B: spatially tiled stacked-tap conv ----------------
    est_b = (2 * C_in_p * TN * 2          # main x tile, double-buffered, bf16
             + 2 * C_in_p * HB * 2        # halo tile
             + 2 * C_out_p * K * 2        # per-sample weight
             + 2 * C_out_p * TN * 4       # output tile
             + K * TN * 2)                # stacked scratch
    limit_b = int(min(max(2 * est_b, 32 * 2**20), 96 * 2**20))

    conv_kern = functools.partial(_conv_kernel, k=ksize, Wpad=Wpad, TN=TN, C_in_p=C_in_p)

    out_flat = pl.pallas_call(
        conv_kern,
        out_shape=jax.ShapeDtypeStruct((B, C_out_p, N_pad), out_dtype),
        grid=(B, T),
        in_specs=[
            pl.BlockSpec((1, C_out_p, K), lambda b, j: (b, 0, 0)),                # ww (per sample)
            pl.BlockSpec((1, C_in_p, TN), lambda b, j: (b, 0, j)),                # x main tile
            pl.BlockSpec((1, C_in_p, HB), lambda b, j: (b, 0, (j + 1) * hb_per_tn)),  # x halo tile
        ],
        out_specs=pl.BlockSpec((1, C_out_p, TN), lambda b, j: (b, 0, j)),
        scratch_shapes=[pltpu.VMEM((K, TN), jnp.bfloat16)],
        compiler_params=pltpu.CompilerParams(
            dimension_semantics=("parallel", "parallel"),
            vmem_limit_bytes=limit_b),
    )(ww, x_flat, x_flat)

    # ---------------- crop (cheap slice + view reshape, no full pad pass) ----------------
    out = out_flat[:, :C_out, :N_out].reshape(B, C_out, H, Wpad)[:, :, :, :W]
    return out


# --------------------------------------------------------------------------- params / reference
def init_params(key, dlatent_size, in_channel, out_channel, ksize,
                gain=1.0, use_wscale=True, lrmul=1.0):
    k1, k2 = jax.random.split(key)
    # EqualizedLinear(dlatent_size -> in_channel, bias_init=1.0)
    he_std_mod = gain * dlatent_size ** (-0.5)
    init_std_mod = (1.0 / lrmul) if use_wscale else (he_std_mod / lrmul)
    mod_w_mul = (he_std_mod * lrmul) if use_wscale else lrmul
    mod_weight = jax.random.normal(k1, (in_channel, dlatent_size), jnp.float32) * init_std_mod
    mod_bias = jnp.full((in_channel,), 1.0, jnp.float32)
    # conv weight
    he_std = gain * (in_channel * ksize ** 2) ** (-0.5)
    init_std = (1.0 / lrmul) if use_wscale else (he_std / lrmul)
    w_mul = (he_std * lrmul) if use_wscale else lrmul
    weight = jax.random.normal(k2, (1, out_channel, in_channel, ksize, ksize), jnp.float32) * init_std
    return dict(weight=weight, w_mul=w_mul,
                mod_weight=mod_weight, mod_bias=mod_bias,
                mod_w_mul=mod_w_mul, mod_b_mul=lrmul)


def _reference(x, y, params, *, ksize, demodulate=True):
    # pure-JAX transcription of the PyTorch forward (base path), full f32
    s = (jnp.einsum("bd,cd->bc", y, params["mod_weight"] * params["mod_w_mul"],
                    precision=jax.lax.Precision.HIGHEST)
         + params["mod_bias"] * params["mod_b_mul"])                         # (B, C_in)
    ww = params["w_mul"] * params["weight"] * s[:, None, :, None, None]      # (B, Co, Ci, k, k)
    if demodulate:
        d = jax.lax.rsqrt(jnp.sum(ww * ww, axis=(2, 3, 4)) + 1e-8)
        ww = ww * d[:, :, None, None, None]
    p = ksize // 2

    def one(xb, wb):
        return jax.lax.conv_general_dilated(
            xb[None], wb, window_strides=(1, 1), padding=((p, p), (p, p)),
            dimension_numbers=("NCHW", "OIHW", "NCHW"),
            precision=jax.lax.Precision.HIGHEST)[0]

    return jax.vmap(one)(x, ww)


# --------------------------------------------------------------------------- main
if __name__ == "__main__":
    key = jax.random.PRNGKey(0)
    B, C_in, C_out, H, W = 2, 4, 8, 16, 16
    dlatent, ksize = 32, 3

    kx, ky, kp = jax.random.split(key, 3)
    x = jax.random.normal(kx, (B, C_in, H, W), dtype=jnp.float32)
    y = jax.random.normal(ky, (B, dlatent), dtype=jnp.float32)
    params = init_params(kp, dlatent, C_in, C_out, ksize)

    out = equalized_mod_conv2d(x, y, params, ksize=ksize, demodulate=True)
    out = jax.block_until_ready(out)

    ref = _reference(x, y, params, ksize=ksize, demodulate=True)
    assert out.shape == (B, C_out, H, W), out.shape
    # bf16 operands at the MXU (f32 accumulation / demod) -> slightly looser tolerance
    assert jnp.allclose(out, ref, atol=2e-2, rtol=2e-2), "mismatch vs reference"

    print("KERNEL_OK")
</pallas_src>

<mosaic_0001>
module attributes {stable_mosaic.version = 11 : i64} {
  func.func @_modulate_kernel(%arg0: i32, %arg1: memref<1x1x32xf32, #tpu.memory_space<vmem>>, %arg2: memref<32x16xf32, #tpu.memory_space<vmem>>, %arg3: memref<1x16xf32, #tpu.memory_space<vmem>>, %arg4: memref<1x8x144xf32, #tpu.memory_space<vmem>>, %arg5: memref<1x8x144xbf16, #tpu.memory_space<vmem>>) attributes {dimension_semantics = [#tpu.dimension_semantics<parallel>], iteration_bounds = array<i64: 2>, scalar_prefetch = 0 : i64, scratch_operands = 0 : i64, tpu.core_type = #tpu.core_type<tc>, window_params = [{transform_indices = @transform_0, window_bounds = array<i64: 1, 1, 32>}, {pipeline_mode = #tpu.pipeline_mode<synchronous>, transform_indices = @transform_1, window_bounds = array<i64: 32, 16>}, {pipeline_mode = #tpu.pipeline_mode<synchronous>, transform_indices = @transform_2, window_bounds = array<i64: 1, 16>}, {pipeline_mode = #tpu.pipeline_mode<synchronous>, transform_indices = @transform_3, window_bounds = array<i64: 1, 8, 144>}, {transform_indices = @transform_4, window_bounds = array<i64: 1, 8, 144>}]} {
    %c0 = arith.constant 0 : index
    %c0_0 = arith.constant 0 : index
    %c0_1 = arith.constant 0 : index
    %0 = vector.load %arg1[%c0, %c0_0, %c0_1] : memref<1x1x32xf32, #tpu.memory_space<vmem>>, vector<1x1x32xf32>
    %1 = vector.shape_cast %0 : vector<1x1x32xf32> to vector<1x32xf32>
    %c0_2 = arith.constant 0 : index
    %c0_3 = arith.constant 0 : index
    %2 = vector.load %arg2[%c0_2, %c0_3] : memref<32x16xf32, #tpu.memory_space<vmem>>, vector<32x16xf32>
    %cst = arith.constant dense<0.000000e+00> : vector<1x16xf32>
    %3 = tpu.matmul %1, %2, %cst {dimension_numbers = #tpu.dot_dimension_numbers<[1], [0], [0], [1], [0, 0, 1, 1], [], []>} : vector<1x32xf32>, vector<32x16xf32>, vector<1x16xf32> -> vector<1x16xf32>
    %cst_4 = arith.constant 0.176776692 : f32
    %4 = vector.broadcast %cst_4 : f32 to vector<1x16xf32>
    %5 = arith.mulf %3, %4 : vector<1x16xf32>
    %c0_5 = arith.constant 0 : index
    %c0_6 = arith.constant 0 : index
    %6 = vector.load %arg3[%c0_5, %c0_6] : memref<1x16xf32, #tpu.memory_space<vmem>>, vector<1x16xf32>
    %cst_7 = arith.constant 1.000000e+00 : f32
    %7 = vector.broadcast %cst_7 : f32 to vector<1x16xf32>
    %8 = arith.mulf %6, %7 : vector<1x16xf32>
    %9 = arith.addf %5, %8 : vector<1x16xf32>
    %10 = tpu.concatenate %9, %9, %9, %9, %9, %9, %9, %9, %9 in 1 : vector<1x16xf32>, vector<1x16xf32>, vector<1x16xf32>, vector<1x16xf32>, vector<1x16xf32>, vector<1x16xf32>, vector<1x16xf32>, vector<1x16xf32>, vector<1x16xf32> -> vector<1x144xf32>
    %c0_8 = arith.constant 0 : index
    %c0_9 = arith.constant 0 : index
    %c0_10 = arith.constant 0 : index
    %11 = vector.load %arg4[%c0_8, %c0_9, %c0_10] : memref<1x8x144xf32, #tpu.memory_space<vmem>>, vector<1x8x144xf32>
    %12 = vector.shape_cast %11 : vector<1x8x144xf32> to vector<8x144xf32>
    %cst_11 = arith.constant 0.166666672 : f32
    %13 = vector.broadcast %cst_11 : f32 to vector<8x144xf32>
    %14 = arith.mulf %12, %13 : vector<8x144xf32>
    %15 = vector.broadcast %10 : vector<1x144xf32> to vector<8x144xf32>
    %16 = arith.mulf %14, %15 : vector<8x144xf32>
    %17 = arith.mulf %16, %16 : vector<8x144xf32>
    %cst_12 = arith.constant dense<0.000000e+00> : vector<8xf32>
    %18 = vector.multi_reduction <add>, %17, %cst_12 [1] : vector<8x144xf32> to vector<8xf32>
    %19 = vector.shape_cast %18 : vector<8xf32> to vector<8x1xf32>
    %cst_13 = arith.constant 9.99999993E-9 : f32
    %20 = vector.broadcast %cst_13 : f32 to vector<8x1xf32>
    %21 = arith.addf %19, %20 : vector<8x1xf32>
    %22 = math.rsqrt %21 : vector<8x1xf32>
    %23 = vector.broadcast %22 : vector<8x1xf32> to vector<8x144xf32>
    %24 = arith.mulf %16, %23 : vector<8x144xf32>
    %25 = arith.truncf %24 : vector<8x144xf32> to vector<8x144xbf16>
    %c0_14 = arith.constant 0 : index
    %c0_15 = arith.constant 0 : index
    %c0_16 = arith.constant 0 : index
    %26 = vector.load %arg5[%c0_14, %c0_15, %c0_16] : memref<1x8x144xbf16, #tpu.memory_space<vmem>>, vector<1x8x144xbf16>
    %27 = vector.shape_cast %26 : vector<1x8x144xbf16> to vector<8x144xbf16>
    %28 = vector.shape_cast %25 : vector<8x144xbf16> to vector<1x8x144xbf16>
    tpu.vector_store %arg5[%c0_14, %c0_15, %c0_16], %28 {strides = array<i32>} : memref<1x8x144xbf16, #tpu.memory_space<vmem>>, vector<1x8x144xbf16>,
    return
  }
  func.func @transform_0(%arg0: i32) -> (i32, i32, i32) {
    %c0_i32 = arith.constant 0 : i32
    %c0_i32_0 = arith.constant 0 : i32
    %c0_i32_1 = arith.constant 0 : i32
    return %arg0, %c0_i32, %c0_i32_0 : i32, i32, i32
  }
  func.func @transform_1(%arg0: i32) -> (i32, i32) {
    %c0_i32 = arith.constant 0 : i32
    %c0_i32_0 = arith.constant 0 : i32
    %c0_i32_1 = arith.constant 0 : i32
    return %c0_i32, %c0_i32_0 : i32, i32
  }
  func.func @transform_2(%arg0: i32) -> (i32, i32) {
    %c0_i32 = arith.constant 0 : i32
    %c0_i32_0 = arith.constant 0 : i32
    %c0_i32_1 = arith.constant 0 : i32
    return %c0_i32, %c0_i32_0 : i32, i32
  }
  func.func @transform_3(%arg0: i32) -> (i32, i32, i32) {
    %c0_i32 = arith.constant 0 : i32
    %c0_i32_0 = arith.constant 0 : i32
    %c0_i32_1 = arith.constant 0 : i32
    %c0_i32_2 = arith.constant 0 : i32
    return %c0_i32, %c0_i32_0, %c0_i32_1 : i32, i32, i32
  }
  func.func @transform_4(%arg0: i32) -> (i32, i32, i32) {
    %c0_i32 = arith.constant 0 : i32
    %c0_i32_0 = arith.constant 0 : i32
    %c0_i32_1 = arith.constant 0 : i32
    return %arg0, %c0_i32, %c0_i32_0 : i32, i32, i32
  }
}

</mosaic_0001>

<llo_original>
// kernel: tpu_custom_call.1
$region0: #{tpu_custom_call.1}
  #allocation0 [shape = 'u32[]', space=smem, size = 0x4, offset = 0x4, fixed_abs, tag = 'smem constant byte address 0x4 - core index']
  #allocation1 [shape = 'u32[144,128]{1,0:T(1,128)}', space=vmem, size = 0x12000, scoped, tag = 'internal scratch']
  %s0 = inlined_call_operand.vmem [shape: f32[2,1,32], index: 0, kind: input, shape index: {}]
  %s1 = inlined_call_operand.vmem [shape: f32[32,16], index: 1, kind: input, shape index: {}]
  %s2 = inlined_call_operand.vmem [shape: f32[1,16], index: 2, kind: input, shape index: {}]
  %s3 = inlined_call_operand.vmem [shape: f32[1,8,144], index: 3, kind: input, shape index: {}]
  %s4 = inlined_call_operand.hbm [shape: bf16[2,8,144], index: 4, kind: output, shape index: {}]
  %s5 = sld [smem:[#allocation0]]
  $region49: #{tpu_custom_call.1} parent=0
    _
  %s7 = ssub.s32 1, %s5
  %s8 = scalar_select 0, %s7, %s5
  $region1: #{tpu_custom_call.1} parent=0
    #allocation2 [shape = 'u8[8192]{0}', space=vmem, size = 0x2000, scoped, tag = 'output window, operand 0']
    #allocation3 [shape = 's32[2]{0}', space=sflag, size = 0x8, scoped, tag = 'scoped memory for tpu_custom_call.1']
    %9 = vsyncpa [#allocation3], 0
    %s10 = scalar_lea.sflag [#allocation3], 1
    %11 = vsyncpa %s10, 0
    loop: start=0, step=1, limit=4
    $region2: #{tpu_custom_call.1} parent=1 // loop_pre_header
      _
    $region3: #{tpu_custom_call.1} parent=1 // loop_header
      %s13 = sphi 0, %s17
      %p14 = scmp.ge.s32.totalorder %s13, 4
      %s23 = sphi 0, %s25
      %s26 = sphi 0, %s23
      %s27 = sphi 0, %s26
      %s43 = sphi 0, %s27
      %s47 = sphi 0, %s47
      %s49 = sphi 0, %s47
      %s50 = sphi 0, %s49
      %s64 = sphi 0, %s50
      %s68 = sphi 0, %s68
      %s70 = sphi 0, %s68
      %s71 = sphi 0, %s70
      %s85 = sphi 0, %s71
      %s89 = sphi 0, %s89
      %s91 = sphi 0, %s89
      %s92 = sphi 0, %s91
      %s106 = sphi 0, %s92
      %s112 = sphi 0, %s114
      %s115 = sphi 0, %s112
      %s116 = sphi 0, %s115
      %s132 = sphi 0, %s116
    $region4: #{tpu_custom_call.1} parent=1 // loop_header_branch
      %16 = sbr.rel (%p14) target = $region8
    $region5: #{tpu_custom_call.1} parent=1 // loop_body
      %s18 = ssub.s32 %s13, 1
      %s19 = ssub.s32 %s13, 2
      %s20 = sadd.s32 %s13, 1
      %s21 = ssub.s32 %s13, %s20
      %p22 = scmp.eq.s32.totalorder %s21, 0
      %s24 = sadd.s32 %s23, 1
      %s25 = scalar_select %p22, %s23, %s24
      %p28 = pneg %p22
      %p29 = scmp.eq.s32.totalorder %s13, 1
      %p30 = por %p28, %p29
      %p31 = scmp.ne.s32.totalorder %s23, %s26
      %p32 = scmp.eq.s32.totalorder %s13, 0
      %p33 = por %p31, %p32
      %p34 = scmp.ne.s32.totalorder %s23, %s26
      %p35 = scmp.eq.s32.totalorder %s18, 1
      %p36 = por %p34, %p35
      %p37 = scmp.ne.s32.totalorder %s26, %s27
      %p38 = scmp.eq.s32.totalorder %s18, 0
      %p39 = por %p37, %p38
      %p40 = scmp.ne.s32.totalorder %s26, %s27
      %p41 = scmp.eq.s32.totalorder %s19, 1
      %p42 = por %p40, %p41
      %p44 = scmp.ne.s32.totalorder %s27, %s43
      %p45 = scmp.eq.s32.totalorder %s19, 0
      %p46 = por %p44, %p45
      %s48 = sadd.s32 %s47, 1
      %p51 = scmp.eq.s32.totalorder %s13, 1
      %p52 = scmp.ne.s32.totalorder %s47, %s49
      %p53 = scmp.eq.s32.totalorder %s13, 0
      %p54 = por %p52, %p53
      %p55 = scmp.ne.s32.totalorder %s47, %s49
      %p56 = scmp.eq.s32.totalorder %s18, 1
      %p57 = por %p55, %p56
      %p58 = scmp.ne.s32.totalorder %s49, %s50
      %p59 = scmp.eq.s32.totalorder %s18, 0
      %p60 = por %p58, %p59
      %p61 = scmp.ne.s32.totalorder %s49, %s50
      %p62 = scmp.eq.s32.totalorder %s19, 1
      %p63 = por %p61, %p62
      %p65 = scmp.ne.s32.totalorder %s50, %s64
      %p66 = scmp.eq.s32.totalorder %s19, 0
      %p67 = por %p65, %p66
      %s69 = sadd.s32 %s68, 1
      %p72 = scmp.eq.s32.totalorder %s13, 1
      %p73 = scmp.ne.s32.totalorder %s68, %s70
      %p74 = scmp.eq.s32.totalorder %s13, 0
      %p75 = por %p73, %p74
      %p76 = scmp.ne.s32.totalorder %s68, %s70
      %p77 = scmp.eq.s32.totalorder %s18, 1
      %p78 = por %p76, %p77
      %p79 = scmp.ne.s32.totalorder %s70, %s71
      %p80 = scmp.eq.s32.totalorder %s18, 0
      %p81 = por %p79, %p80
      %p82 = scmp.ne.s32.totalorder %s70, %s71
      %p83 = scmp.eq.s32.totalorder %s19, 1
      %p84 = por %p82, %p83
      %p86 = scmp.ne.s32.totalorder %s71, %s85
      %p87 = scmp.eq.s32.totalorder %s19, 0
      %p88 = por %p86, %p87
      %s90 = sadd.s32 %s89, 1
      %p93 = scmp.eq.s32.totalorder %s13, 1
      %p94 = scmp.ne.s32.totalorder %s89, %s91
      %p95 = scmp.eq.s32.totalorder %s13, 0
      %p96 = por %p94, %p95
      %p97 = scmp.ne.s32.totalorder %s89, %s91
      %p98 = scmp.eq.s32.totalorder %s18, 1
      %p99 = por %p97, %p98
      %p100 = scmp.ne.s32.totalorder %s91, %s92
      %p101 = scmp.eq.s32.totalorder %s18, 0
      %p102 = por %p100, %p101
      %p103 = scmp.ne.s32.totalorder %s91, %s92
      %p104 = scmp.eq.s32.totalorder %s19, 1
      %p105 = por %p103, %p104
      %p107 = scmp.ne.s32.totalorder %s92, %s106
      %p108 = scmp.eq.s32.totalorder %s19, 0
      %p109 = por %p107, %p108
      %s110 = ssub.s32 %s13, %s20
      %p111 = scmp.eq.s32.totalorder %s110, 0
      %s113 = sadd.s32 %s112, 1
      %s114 = scalar_select %p111, %s112, %s113
      %p117 = pneg %p111
      %p118 = scmp.eq.s32.totalorder %s13, 1
      %p119 = por %p117, %p118
      %p120 = scmp.ne.s32.totalorder %s112, %s115
      %p121 = scmp.eq.s32.totalorder %s13, 0
      %p122 = por %p120, %p121
      %p123 = scmp.ne.s32.totalorder %s112, %s115
      %p124 = scmp.eq.s32.totalorder %s18, 1
      %p125 = por %p123, %p124
      %p126 = scmp.ne.s32.totalorder %s115, %s116
      %p127 = scmp.eq.s32.totalorder %s18, 0
      %p128 = por %p126, %p127
      %p129 = scmp.ne.s32.totalorder %s115, %s116
      %p130 = scmp.eq.s32.totalorder %s19, 1
      %p131 = por %p129, %p130
      %p133 = scmp.ne.s32.totalorder %s116, %s132
      %p134 = scmp.eq.s32.totalorder %s19, 0
      %p135 = por %p133, %p134
      %p136 = scmp.le.s32.totalorder 1, %s13
      %p137 = scmp.lt.s32.totalorder %s13, 3
      %p138 = pnand %p136, %p137
      %p139 = pneg %p138
      // Predicated region
      $region9: #{tpu_custom_call.1} parent=5 // pred_check
        _
      $region10: #{tpu_custom_call.1} parent=5 // pred_check_branch
        %141 = sbr.rel (%p138) target = $region12
      $region11: #{tpu_custom_call.1} parent=5 // pred_region
        %s142 = ssub.s32 %s13, 1
        // Predicated region
        $region13: #{tpu_custom_call.1} parent=11 // pred_check
          %p143 = pneg %p60
        $region14: #{tpu_custom_call.1} parent=11 // pred_check_branch
          %145 = sbr.rel (%p143) target = $region16
        $region15: #{tpu_custom_call.1} parent=11 // pred_region
          _
        $region16: #{tpu_custom_call.1} parent=11 // pred_fallthru
          _
        // Predicated region
        $region17: #{tpu_custom_call.1} parent=11 // pred_check
          %p146 = pneg %p81
        $region18: #{tpu_custom_call.1} parent=11 // pred_check_branch
          %148 = sbr.rel (%p146) target = $region20
        $region19: #{tpu_custom_call.1} parent=11 // pred_region
          _
        $region20: #{tpu_custom_call.1} parent=11 // pred_fallthru
          _
        // Predicated region
        $region21: #{tpu_custom_call.1} parent=11 // pred_check
          %p149 = pneg %p102
        $region22: #{tpu_custom_call.1} parent=11 // pred_check_branch
          %151 = sbr.rel (%p149) target = $region24
        $region23: #{tpu_custom_call.1} parent=11 // pred_region
          _
        $region24: #{tpu_custom_call.1} parent=11 // pred_fallthru
          _
      $region12: #{tpu_custom_call.1} parent=5 // pred_fallthru
        _
      %p152 = scmp.lt.s32.totalorder %s13, 2
      // Predicated region
      $region25: #{tpu_custom_call.1} parent=5 // pred_check
        %p153 = pneg %p152
      $region26: #{tpu_custom_call.1} parent=5 // pred_check_branch
        %155 = sbr.rel (%p153) target = $region28
      $region27: #{tpu_custom_call.1} parent=5 // pred_region
        // Predicated region
        $region29: #{tpu_custom_call.1} parent=27 // pred_check
          %p156 = pneg %p33
        $region30: #{tpu_custom_call.1} parent=27 // pred_check_branch
          %158 = sbr.rel (%p156) target = $region32
        $region31: #{tpu_custom_call.1} parent=27 // pred_region
          %p159 = scmp.lt.s32.totalorder %s13, 1
          %s160 = scalar_select %p159, %s13, 1
          %s161 = scalar_lea.vmem %s0, %s160
        $region32: #{tpu_custom_call.1} parent=27 // pred_fallthru
          _
      $region28: #{tpu_custom_call.1} parent=5 // pred_fallthru
        _
      %p162 = scmp.le.s32.totalorder 1, %s13
      %p163 = scmp.lt.s32.totalorder %s13, 3
      %p164 = pnand %p162, %p163
      %p165 = pneg %p164
      // Predicated region
      $region33: #{tpu_custom_call.1} parent=5 // pred_check
        _
      $region34: #{tpu_custom_call.1} parent=5 // pred_check_branch
        %167 = sbr.rel (%p164) target = $region36
      $region35: #{tpu_custom_call.1} parent=5 // pred_region
        %s168 = ssub.s32 %s13, 1
        %p169 = scmp.lt.s32.totalorder %s18, 1
        %s170 = scalar_select %p169, %s18, 1
        %s171 = scalar_lea.vmem %s0, %s170
        %p172 = pneg %p39
        %p173 = pneg %p36
        %p174 = pneg %p60
        %p175 = pneg %p57
        %p176 = pneg %p81
        %p177 = pneg %p78
        %p178 = pneg %p102
        %p179 = pneg %p99
        %p180 = pneg %p128
        %p181 = pneg %p125
        %s182 = sand.u32 %s115, 1
        %s183 = scalar_lea.sflag [#allocation3], %s182
        %s184 = sand.u32 %s115, 1
        %s185 = smul.addr %s184, 8
        %s186 = scalar_lea.vmem [#allocation2], %s185
        %p187 = scmp.lt.s32.totalorder %s18, 1
        %s188 = scalar_select %p187, %s18, 1
        %s189 = scalar_lea.vmem %s0, %s188
        %v190 = vld [vmem:[%s189] sm:$0x1]
        %v191 = vld [vmem:[%s1] sm:$0xff]
        %v192 = vld [vmem:[%s1 + $0x8] sm:$0xff]
        %v193 = vld [vmem:[%s1 + $0x10] sm:$0xff]
        %v194 = vld [vmem:[%s1 + $0x18] sm:$0xff]
        %vm195 = vcmask 261120
        %v197 = vsel %vm195, %v190, 0
        %199 = vmatprep.subr.mxu0 0.0
        %200 = vmatpush1.msra.mxu0 0.0
        %201 = vmatprep.subr.mxu0 0.0
        %202 = vmatpush1.msra.mxu0 0.0
        %203 = vmatprep.subr.mxu0 0.0
        %204 = vmatpush1.msra.mxu0 0.0
        %205 = vmatprep.subr.mxu0 0.0
        %206 = vmatpush1.msra.mxu0 0.0
        %207 = vmatprep.subr.mxu0 0.0
        %208 = vmatpush1.msra.mxu0 0.0
        %209 = vmatprep.subr.mxu0 0.0
        %210 = vmatpush1.msra.mxu0 0.0
        %211 = vmatprep.subr.mxu0 0.0
        %212 = vmatpush1.msra.mxu0 0.0
        %213 = vmatprep.subr.mxu0 0.0
        %214 = vmatpush1.msra.mxu0 0.0
        %215 = vmatprep.subr.mxu0 0.0
        %216 = vmatpush1.msra.mxu0 0.0
        %217 = vmatprep.subr.mxu0 0.0
        %218 = vmatpush1.msra.mxu0 0.0
        %219 = vmatprep.subr.mxu0 0.0
        %220 = vmatpush1.msra.mxu0 0.0
        %221 = vmatprep.subr.mxu0 0.0
        %222 = vmatpush1.msra.mxu0 0.0
        %223 = vmatprep.subr.mxu0 0.0
        %224 = vmatpush1.msra.mxu0 %v194
        %225 = vmatprep.subr.mxu0 0.0
        %226 = vmatpush1.msra.mxu0 %v193
        %227 = vmatprep.subr.mxu0 0.0
        %228 = vmatpush1.msra.mxu0 %v192
        %229 = vmatprep.subr.mxu0 0.0
        %230 = vmatpush1.msra.mxu0 %v191
        %231 = vmatprep.subr.mxu0 0.0
        %232 = vmatpush2.msra.mxu0 0.0
        %233 = vmatprep.subr.mxu0 0.0
        %234 = vmatpush2.msra.mxu0 0.0
        %235 = vmatprep.subr.mxu0 0.0
        %236 = vmatpush2.msra.mxu0 0.0
        %237 = vmatprep.subr.mxu0 0.0
        %238 = vmatpush2.msra.mxu0 0.0
        %239 = vmatprep.subr.mxu0 0.0
        %240 = vmatpush2.msra.mxu0 0.0
        %241 = vmatprep.subr.mxu0 0.0
        %242 = vmatpush2.msra.mxu0 0.0
        %243 = vmatprep.subr.mxu0 0.0
        %244 = vmatpush2.msra.mxu0 0.0
        %245 = vmatprep.subr.mxu0 0.0
        %246 = vmatpush2.msra.mxu0 0.0
        %247 = vmatprep.subr.mxu0 0.0
        %248 = vmatpush2.msra.mxu0 0.0
        %249 = vmatprep.subr.mxu0 0.0
        %250 = vmatpush2.msra.mxu0 0.0
        %251 = vmatprep.subr.mxu0 0.0
        %252 = vmatpush2.msra.mxu0 0.0
        %253 = vmatprep.subr.mxu0 0.0
        %254 = vmatpush2.msra.mxu0 0.0
        %255 = vmatprep.subr.mxu0 0.0
        %256 = vmatpush2.msra.mxu0 0.0
        %257 = vmatprep.subr.mxu0 0.0
        %258 = vmatpush2.msra.mxu0 0.0
        %259 = vmatprep.subr.mxu0 0.0
        %260 = vmatpush2.msra.mxu0 0.0
        %261 = vmatprep.subr.mxu0 0.0
        %262 = vmatpush2.msra.mxu0 0.0
        %263 = vmatprep.mubr.f32.mxu0 0.0
        %264 = vmatmul.mubr.f32.gmra.mxu0 %v197
        %v265 = vpop.f32.mrf.mxu0
        %v266 = vadd.f32 0.0, %v265
        %v267 = vpop.f32.mrf.mxu0
        %268 = vdwg.mxu0
        %v269 = vmul.f32 %v266, 0.17677669
        %v270 = vld [vmem:[%s2] sm:$0x1]
        %v271 = vadd.f32 %v269, %v270
        %273 = vrot.lane.b32.xlu0 %v271, 16
        %v274 = vpop.permute.xlu0 %273
        %276 = vrot.lane.b32.xlu0 %v271, 32
        %v277 = vpop.permute.xlu0 %276
        %279 = vrot.lane.b32.xlu0 %v271, 48
        %v280 = vpop.permute.xlu0 %279
        %282 = vrot.lane.b32.xlu0 %v271, 64
        %v283 = vpop.permute.xlu0 %282
        %285 = vrot.lane.b32.xlu0 %v271, 80
        %v286 = vpop.permute.xlu0 %285
        %288 = vrot.lane.b32.xlu0 %v271, 96
        %v289 = vpop.permute.xlu0 %288
        %291 = vrot.lane.b32.xlu0 %v271, 112
        %v292 = vpop.permute.xlu0 %291
        %vm294 = vcmask 130048
        %v295 = vsel %vm294, %v271, %v274
        %v296 = vsel %vm195, %v295, %v277
        %vm297 = vcmask 392192
        %v298 = vsel %vm297, %v296, %v280
        %vm299 = vcmask 523264
        %v300 = vsel %vm299, %v298, %v283
        %vm301 = vcmask 654336
        %v302 = vsel %vm301, %v300, %v286
        %vm303 = vcmask 785408
        %v304 = vsel %vm303, %v302, %v289
        %vm305 = vcmask 916480
        %v306 = vsel %vm305, %v304, %v292
        %v307 = vld [vmem:[%s3] sm:$0xff]
        %v308 = vld [vmem:[%s3 + $0x8] sm:$0xff]
        %v309 = vmul.f32 %v307, 0.16666667
        %v310 = vmul.f32 %v308, 0.16666667
        %v311 = vlaneseq
        %v312 = vshrl.u32 %v311, 7
        %v313 = vsub.s32 0, %v312
        %v314 = vrot.slane %v306, %v313
        %v315 = vlaneseq
        %v316 = vshrl.u32 %v315, 7
        %v317 = vsub.s32 0, %v316
        %v318 = vrot.slane %v271, %v317
        %v319 = vmul.f32 %v309, %v314
        %v320 = vmul.f32 %v310, %v318
        %v321 = vmul.f32 %v319, %v319
        %v322 = vmul.f32 %v320, %v320
        %v323 = vsel %vm294, %v322, 0.0
        %v324 = vadd.f32 %v321, %v323
        %325 = vadd.xlane.f32.xlu0 %v324
        %v326 = vpop.xlane.xlu0 %325
        %v327 = vadd.f32 %v326, 1e-08
        %v328 = vrsqrt.pop %v327
        %v329 = vmul.f32 %v319, %v328
        %v330 = vmul.f32 %v320, %v328
        %v331 = vpack.c.bf16 %v329, %v329
        %v332 = vpack.c.bf16 %v330, %v330
        %v335 = vunpack.c.l.b16 %v331
        %v336 = vunpack.c.l.b16 %v332
        %v337 = vpack.c.b16 %v336, %v335
        %vm339 = vcmask 1043456
        %vm340 = vcmask 130052
        %vm341 = vmor %vm340, %vm339
        %342 = vst.msk [vmem:[%s186] sm:$0xff] %vm341, %v337
        %s343 = sand.u32 %s115, 1
        %s344 = scalar_lea.sflag [#allocation3], %s343
        %s345 = sand.u32 %s115, 1
        %s346 = smul.addr %s345, 8
        %s347 = scalar_lea.vmem [#allocation2], %s346
        // Predicated region
        $region37: #{tpu_custom_call.1} parent=35 // pred_check
          %p348 = pneg %p125
        $region38: #{tpu_custom_call.1} parent=35 // pred_check_branch
          %350 = sbr.rel (%p348) target = $region40
        $region39: #{tpu_custom_call.1} parent=35 // pred_region
          %s352 = ssub.s32 128, 128
          %353 = vsyncadd %s344, %s352
          %s354 = smul.addr %s18, 2
          %s355 = smul.addr %s354, 64
          %s356 = scalar_lea.hbm %s4, %s355
          %s358 = sshll.u32 %s347, 4
          %s359 = int_to_ptr.vmem [resolvable:$true] %s358
          %361 = dma.vmem_to_hbm [thread:$0]  %s359, 128, %s356, %s344
        $region40: #{tpu_custom_call.1} parent=35 // pred_fallthru
          _
      $region36: #{tpu_custom_call.1} parent=5 // pred_fallthru
        _
      %p362 = scmp.le.s32.totalorder 2, %s13
      // Predicated region
      $region41: #{tpu_custom_call.1} parent=5 // pred_check
        %p363 = pneg %p362
      $region42: #{tpu_custom_call.1} parent=5 // pred_check_branch
        %365 = sbr.rel (%p363) target = $region44
      $region43: #{tpu_custom_call.1} parent=5 // pred_region
        %s366 = ssub.s32 %s13, 2
        // Predicated region
        $region45: #{tpu_custom_call.1} parent=43 // pred_check
          %p367 = pneg %p131
        $region46: #{tpu_custom_call.1} parent=43 // pred_check_branch
          %369 = sbr.rel (%p367) target = $region48
        $region47: #{tpu_custom_call.1} parent=43 // pred_region
          %s370 = sand.u32 %s116, 1
          %s371 = scalar_lea.sflag [#allocation3], %s370
          %s372 = sand.u32 %s116, 1
          %s373 = smul.addr %s372, 8
          %s374 = scalar_lea.vmem [#allocation2], %s373
          %375 = dma.done %s371, 128
        $region48: #{tpu_custom_call.1} parent=43 // pred_fallthru
          _
      $region44: #{tpu_custom_call.1} parent=5 // pred_fallthru
        _
    $region6: #{tpu_custom_call.1} parent=1 // loop_footer
      %s17 = sadd.s32 1, %s13
    $region7: #{tpu_custom_call.1} parent=1 // loop_footer_branch
      %12 = sbr.rel target = $region3
    $region8: #{tpu_custom_call.1} parent=1 // loop_exit
      _
    %376 = vsyncpa [#allocation3], 1
    %s377 = scalar_lea.sflag [#allocation3], 1
    %378 = vsyncpa %s377, 1

</llo_original>
